<compile_context>
chip_gen: v7x
topology: tpu7x:2x2x1
jax: 0.10.0
libtpu: 0.0.40
codegen_flags: <defaults>
</compile_context>

<pallas_src>
import math

import jax
import jax.numpy as jnp
from jax.experimental import pallas as pl
from jax.experimental.pallas import tpu as pltpu


def _round_up(x, m):
    return ((x + m - 1) // m) * m


def _implicit_c_kernel(gram_ref, w_ref, b_ref, imp_ref, out_ref, acc_ref):
    # gram_ref: (TB, TK)      flattened gram tile (streamed)
    # w_ref:    (TK, NI)      pre-transposed Linear weight tile (streamed)
    # b_ref:    (1, NI)       Linear bias (VMEM-resident)
    # imp_ref:  (NI, C_pad)   implicit-knowledge matrix, pre-transposed (resident)
    # out_ref:  (TB, C_pad)   output tile (resident across the K axis)
    # acc_ref:  (TB, NI) f32  accumulator scratch
    k = pl.program_id(1)

    @pl.when(k == 0)
    def _init():
        acc_ref[...] = jnp.zeros_like(acc_ref)

    # Partial (TB, TK) @ (TK, NI), accumulated in fp32 on the MXU.
    acc_ref[...] += jnp.dot(gram_ref[...], w_ref[...],
                            preferred_element_type=jnp.float32)

    @pl.when(k == pl.num_programs(1) - 1)
    def _finalize():
        p = acc_ref[...] + b_ref[...].astype(jnp.float32)            # (TB, NI)
        denom = jnp.sum(p, axis=1, keepdims=True) + 1e-12            # (TB, 1)
        p_norm = p * pl.reciprocal(denom, approx=False)
        out = jnp.dot(p_norm, imp_ref[...].astype(jnp.float32),
                      preferred_element_type=jnp.float32)            # (TB, C_pad)
        out_ref[...] = out.astype(out_ref.dtype)


def implicit_c_forward(gram, imp, w, b, *, stream_dtype=None,
                       max_tb=128, max_tk=512):
    """gram: (B, C, C); imp: (1, C, num_imp); w: (num_imp, C*C); b: (num_imp,)
    Returns (B, C, 1, 1), matching the PyTorch module output."""
    B, C, C2 = gram.shape
    assert C == C2
    num_imp = imp.shape[-1]
    K = C * C

    stream_dt = jnp.float32 if stream_dtype is None else stream_dtype
    stream_bytes = jnp.dtype(stream_dt).itemsize

    # One-time host-side relayouts (no in-kernel transposes).
    gram_flat = gram.reshape(B, K)
    w_t = jnp.transpose(w)                      # (K, num_imp)
    imp_t = jnp.transpose(imp.reshape(C, num_imp))   # (num_imp, C)

    # Tile / pad sizes ((8,128)-aligned; zero padding is exact, see header).
    NI_pad = _round_up(num_imp, 128)
    C_pad = _round_up(C, 128)
    TB = min(max_tb, _round_up(B, 8))
    B_pad = _round_up(B, TB)
    TK = min(max_tk, _round_up(K, 128))
    K_pad = _round_up(K, TK)

    gram_p = jnp.pad(gram_flat.astype(stream_dt),
                     ((0, B_pad - B), (0, K_pad - K)))
    w_p = jnp.pad(w_t.astype(stream_dt),
                  ((0, K_pad - K), (0, NI_pad - num_imp)))
    b_p = jnp.pad(b.reshape(1, num_imp).astype(jnp.float32),
                  ((0, 0), (0, NI_pad - num_imp)))
    imp_p = jnp.pad(imp_t.astype(jnp.float32),
                    ((0, NI_pad - num_imp), (0, C_pad - C)))

    out_padded = pl.pallas_call(
        _implicit_c_kernel,
        out_shape=jax.ShapeDtypeStruct((B_pad, C_pad), jnp.float32),
        grid_spec=pltpu.PrefetchScalarGridSpec(
            num_scalar_prefetch=0,
            grid=(B_pad // TB, K_pad // TK),
            in_specs=[
                pl.BlockSpec((TB, TK), lambda i, k: (i, k)),        # gram tile
                pl.BlockSpec((TK, NI_pad), lambda i, k: (k, 0)),    # weight tile
                pl.BlockSpec((1, NI_pad), lambda i, k: (0, 0)),     # bias (resident)
                pl.BlockSpec((NI_pad, C_pad), lambda i, k: (0, 0)), # imp (resident)
            ],
            out_specs=pl.BlockSpec((TB, C_pad), lambda i, k: (i, 0)),
            scratch_shapes=[pltpu.VMEM((TB, NI_pad), jnp.float32)],
        ),
        compiler_params=pltpu.CompilerParams(
            dimension_semantics=("parallel", "arbitrary")),
        cost_estimate=pl.CostEstimate(
            flops=2 * B * K * num_imp + 2 * B * num_imp * C,
            transcendentals=0,
            bytes_accessed=(B * K + K * num_imp) * stream_bytes
                           + (num_imp + num_imp * C + B * C) * 4,
        ),
    )(gram_p, w_p, b_p, imp_p)

    # select_imp = imp1.unsqueeze(3) -> (B, C, 1, 1)
    return out_padded[:B, :C].reshape(B, C, 1, 1)


def init_params(key, channel, num_imp):
    """Deterministic parameter init mirroring Implicit_C.__init__ (gram_mode='gram')."""
    k_imp, k_w, k_b = jax.random.split(key, 3)
    # nn.init.normal_(self.imp, std=0.02); shape (1, channel, num_imp)
    imp = 0.02 * jax.random.normal(k_imp, (1, channel, num_imp), dtype=jnp.float32)
    # nn.Linear(channel*channel, num_imp): uniform(-1/sqrt(fan_in), 1/sqrt(fan_in))
    fan_in = channel * channel
    bound = 1.0 / math.sqrt(fan_in)
    w = jax.random.uniform(k_w, (num_imp, fan_in), jnp.float32, -bound, bound)
    b = jax.random.uniform(k_b, (num_imp,), jnp.float32, -bound, bound)
    return imp, w, b


def reference_forward(gram, imp, w, b):
    """Pure-JAX reference of the PyTorch forward, for verification."""
    B, C, _ = gram.shape
    gram_ = gram.reshape(B, C * C)
    p = gram_ @ w.T + b                                   # (B, num_imp)
    p = p[:, :, None]                                     # (B, num_imp, 1)
    p_ = p / (p.sum(axis=1, keepdims=True) + 1e-12)
    imp1 = jnp.matmul(imp, p_)                            # (B, C, 1) via broadcast
    return imp1[:, :, :, None]                            # (B, C, 1, 1)


def _run_case(key, batch, channel, num_imp, spatial=16):
    k_params, k_x = jax.random.split(key)
    imp, w, b = init_params(k_params, channel, num_imp)
    # Build a gram-like input (B, C, C)
    feats = jax.random.normal(k_x, (batch, channel, spatial), dtype=jnp.float32)
    gram = jnp.einsum("bcs,bds->bcd", feats, feats) / spatial

    out = implicit_c_forward(gram, imp, w, b)
    jax.block_until_ready(out)

    ref = reference_forward(gram, imp, w, b)
    assert out.shape == (batch, channel, 1, 1), out.shape
    err = float(jnp.max(jnp.abs(out - ref)))
    scale = float(jnp.max(jnp.abs(ref))) + 1.0
    assert err / scale < 1e-4, (err, scale)


if __name__ == "__main__":
    key = jax.random.PRNGKey(0)
    k1, k2 = jax.random.split(key)
    # Small case (single tile in every grid axis).
    _run_case(k1, batch=2, channel=8, num_imp=4)
    # Medium case: exercises multi-step K accumulation + padded tails.
    _run_case(k2, batch=10, channel=24, num_imp=4)
    print("KERNEL_OK")
</pallas_src>

<mosaic_0001>
module attributes {stable_mosaic.version = 11 : i64} {
  func.func @_implicit_c_kernel(%arg0: i32, %arg1: i32, %arg2: memref<8x128xf32, #tpu.memory_space<vmem>>, %arg3: memref<128x128xf32, #tpu.memory_space<vmem>>, %arg4: memref<1x128xf32, #tpu.memory_space<vmem>>, %arg5: memref<128x128xf32, #tpu.memory_space<vmem>>, %arg6: memref<8x128xf32, #tpu.memory_space<vmem>>, %arg7: memref<8x128xf32, #tpu.memory_space<vmem>>) attributes {dimension_semantics = [#tpu.dimension_semantics<parallel>, #tpu.dimension_semantics<arbitrary>], iteration_bounds = array<i64: 1, 1>, scalar_prefetch = 0 : i64, scratch_operands = 1 : i64, tpu.core_type = #tpu.core_type<tc>, window_params = [{transform_indices = @transform_0, window_bounds = array<i64: 8, 128>}, {transform_indices = @transform_1, window_bounds = array<i64: 128, 128>}, {pipeline_mode = #tpu.pipeline_mode<synchronous>, transform_indices = @transform_2, window_bounds = array<i64: 1, 128>}, {pipeline_mode = #tpu.pipeline_mode<synchronous>, transform_indices = @transform_3, window_bounds = array<i64: 128, 128>}, {transform_indices = @transform_4, window_bounds = array<i64: 8, 128>}]} {
    %c0_i32 = arith.constant 0 : i32
    %0 = arith.cmpi eq, %arg1, %c0_i32 : i32
    %1 = arith.extui %0 : i1 to i32
    %c0_i32_0 = arith.constant 0 : i32
    %2 = arith.cmpi ne, %1, %c0_i32_0 : i32
    scf.if %2 {
      %cst_10 = arith.constant 0.000000e+00 : f32
      %12 = vector.broadcast %cst_10 : f32 to vector<8x128xf32>
      %c0_11 = arith.constant 0 : index
      %c0_12 = arith.constant 0 : index
      %13 = vector.load %arg7[%c0_11, %c0_12] : memref<8x128xf32, #tpu.memory_space<vmem>>, vector<8x128xf32>
      tpu.vector_store %arg7[%c0_11, %c0_12], %12 {strides = array<i32>} : memref<8x128xf32, #tpu.memory_space<vmem>>, vector<8x128xf32>,
    } else {
    }
    %c0 = arith.constant 0 : index
    %c0_1 = arith.constant 0 : index
    %3 = vector.load %arg7[%c0, %c0_1] : memref<8x128xf32, #tpu.memory_space<vmem>>, vector<8x128xf32>
    %c0_2 = arith.constant 0 : index
    %c0_3 = arith.constant 0 : index
    %4 = vector.load %arg2[%c0_2, %c0_3] : memref<8x128xf32, #tpu.memory_space<vmem>>, vector<8x128xf32>
    %c0_4 = arith.constant 0 : index
    %c0_5 = arith.constant 0 : index
    %5 = vector.load %arg3[%c0_4, %c0_5] : memref<128x128xf32, #tpu.memory_space<vmem>>, vector<128x128xf32>
    %cst = arith.constant dense<0.000000e+00> : vector<8x128xf32>
    %6 = tpu.matmul %4, %5, %cst {dimension_numbers = #tpu.dot_dimension_numbers<[1], [0], [0], [1], [0, 0, 1, 1], [], []>} : vector<8x128xf32>, vector<128x128xf32>, vector<8x128xf32> -> vector<8x128xf32>
    %7 = arith.addf %3, %6 : vector<8x128xf32>
    %c0_6 = arith.constant 0 : index
    %c0_7 = arith.constant 0 : index
    %8 = vector.load %arg7[%c0_6, %c0_7] : memref<8x128xf32, #tpu.memory_space<vmem>>, vector<8x128xf32>
    tpu.vector_store %arg7[%c0_6, %c0_7], %7 {strides = array<i32>} : memref<8x128xf32, #tpu.memory_space<vmem>>, vector<8x128xf32>,
    %c0_i32_8 = arith.constant 0 : i32
    %9 = arith.cmpi eq, %arg1, %c0_i32_8 : i32
    %10 = arith.extui %9 : i1 to i32
    %c0_i32_9 = arith.constant 0 : i32
    %11 = arith.cmpi ne, %10, %c0_i32_9 : i32
    scf.if %11 {
      %c0_10 = arith.constant 0 : index
      %c0_11 = arith.constant 0 : index
      %12 = vector.load %arg7[%c0_10, %c0_11] : memref<8x128xf32, #tpu.memory_space<vmem>>, vector<8x128xf32>
      %c0_12 = arith.constant 0 : index
      %c0_13 = arith.constant 0 : index
      %13 = vector.load %arg4[%c0_12, %c0_13] : memref<1x128xf32, #tpu.memory_space<vmem>>, vector<1x128xf32>
      %14 = vector.broadcast %13 : vector<1x128xf32> to vector<8x128xf32>
      %15 = arith.addf %12, %14 : vector<8x128xf32>
      %cst_14 = arith.constant dense<0.000000e+00> : vector<8xf32>
      %16 = vector.multi_reduction <add>, %15, %cst_14 [1] : vector<8x128xf32> to vector<8xf32>
      %17 = vector.shape_cast %16 : vector<8xf32> to vector<8x1xf32>
      %cst_15 = arith.constant 9.99999996E-13 : f32
      %18 = vector.broadcast %cst_15 : f32 to vector<8x1xf32>
      %19 = arith.addf %17, %18 : vector<8x1xf32>
      %20 = tpu.reciprocal %19 : vector<8x1xf32> -> vector<8x1xf32>
      %21 = vector.broadcast %20 : vector<8x1xf32> to vector<8x128xf32>
      %22 = arith.mulf %15, %21 : vector<8x128xf32>
      %c0_16 = arith.constant 0 : index
      %c0_17 = arith.constant 0 : index
      %23 = vector.load %arg5[%c0_16, %c0_17] : memref<128x128xf32, #tpu.memory_space<vmem>>, vector<128x128xf32>
      %cst_18 = arith.constant dense<0.000000e+00> : vector<8x128xf32>
      %24 = tpu.matmul %22, %23, %cst_18 {dimension_numbers = #tpu.dot_dimension_numbers<[1], [0], [0], [1], [0, 0, 1, 1], [], []>} : vector<8x128xf32>, vector<128x128xf32>, vector<8x128xf32> -> vector<8x128xf32>
      %c0_19 = arith.constant 0 : index
      %c0_20 = arith.constant 0 : index
      %25 = vector.load %arg6[%c0_19, %c0_20] : memref<8x128xf32, #tpu.memory_space<vmem>>, vector<8x128xf32>
      tpu.vector_store %arg6[%c0_19, %c0_20], %24 {strides = array<i32>} : memref<8x128xf32, #tpu.memory_space<vmem>>, vector<8x128xf32>,
    } else {
    }
    return
  }
  func.func @transform_0(%arg0: i32, %arg1: i32) -> (i32, i32) {
    %c0_i32 = arith.constant 0 : i32
    return %arg0, %arg1 : i32, i32
  }
  func.func @transform_1(%arg0: i32, %arg1: i32) -> (i32, i32) {
    %c0_i32 = arith.constant 0 : i32
    %c0_i32_0 = arith.constant 0 : i32
    return %arg1, %c0_i32 : i32, i32
  }
  func.func @transform_2(%arg0: i32, %arg1: i32) -> (i32, i32) {
    %c0_i32 = arith.constant 0 : i32
    %c0_i32_0 = arith.constant 0 : i32
    %c0_i32_1 = arith.constant 0 : i32
    return %c0_i32, %c0_i32_0 : i32, i32
  }
  func.func @transform_3(%arg0: i32, %arg1: i32) -> (i32, i32) {
    %c0_i32 = arith.constant 0 : i32
    %c0_i32_0 = arith.constant 0 : i32
    %c0_i32_1 = arith.constant 0 : i32
    return %c0_i32, %c0_i32_0 : i32, i32
  }
  func.func @transform_4(%arg0: i32, %arg1: i32) -> (i32, i32) {
    %c0_i32 = arith.constant 0 : i32
    %c0_i32_0 = arith.constant 0 : i32
    return %arg0, %c0_i32 : i32, i32
  }
}

</mosaic_0001>

<llo_original>
// kernel: tpu_custom_call.1
$region0: #{tpu_custom_call.1}
  #allocation0 [shape = 'u32[]', space=smem, size = 0x4, offset = 0x4, fixed_abs, tag = 'smem constant byte address 0x4 - core index']
  #allocation1 [shape = 'u32[144,128]{1,0:T(1,128)}', space=vmem, size = 0x12000, scoped, tag = 'internal scratch']
  #allocation2 [shape = 'f32[8,128]{1,0:T(8,128)}', space=vmem, size = 0x1000, scoped, tag = 'scratch operand']
  %s0 = inlined_call_operand.hbm [shape: f32[8,128], index: 0, kind: input, shape index: {}]
  %s1 = inlined_call_operand.hbm [shape: f32[128,128], index: 1, kind: input, shape index: {}]
  %s2 = inlined_call_operand.vmem [shape: f32[1,128], index: 2, kind: input, shape index: {}]
  %s3 = inlined_call_operand.hbm [shape: f32[128,128], index: 3, kind: input, shape index: {}]
  %s4 = inlined_call_operand.hbm [shape: f32[8,128], index: 4, kind: output, shape index: {}]
  %s5 = sld [smem:[#allocation0]]
  $region46: #{tpu_custom_call.1} parent=0
    _
  %s7 = ssub.s32 1, %s5
  %s8 = scalar_select 0, %s7, %s5
  $region1: #{tpu_custom_call.1} parent=0
    #allocation3 [shape = 'u8[4096]{0}', space=vmem, size = 0x1000, scoped, tag = 'input window, operand 0, single buffered']
    #allocation4 [shape = 's32[1]{0}', space=sflag, size = 0x4, scoped, tag = 'scoped memory for tpu_custom_call.1']
    #allocation5 [shape = 's32[1]{0}', space=sflag, size = 0x4, scoped, tag = 'scoped memory for tpu_custom_call.1']
    #allocation6 [shape = 'u8[65536]{0}', space=vmem, size = 0x10000, scoped, tag = 'input window, operand 1, single buffered']
    #allocation7 [shape = 's32[1]{0}', space=sflag, size = 0x4, scoped, tag = 'scoped memory for tpu_custom_call.1']
    #allocation8 [shape = 'u8[65536]{0}', space=vmem, size = 0x10000, scoped, tag = 'input window, operand 3, single buffered']
    #allocation9 [shape = 'u8[4096]{0}', space=vmem, size = 0x1000, scoped, tag = 'output window, operand 0, single buffered']
    %9 = vsyncpa [#allocation4], 0
    %10 = vsyncpa [#allocation7], 0
    %11 = vsyncpa [#allocation5], 0
    // Predicated region
    $region2: #{tpu_custom_call.1} parent=1 // pred_check
      _
    $region3: #{tpu_custom_call.1} parent=1 // pred_check_branch
      %13 = sbr.rel (0) target = $region5
    $region4: #{tpu_custom_call.1} parent=1 // pred_region
      %s15 = ssub.s32 128, 128
      %16 = vsyncadd [#allocation4], %s15
      %s18 = sshll.u32 [#allocation3], 4
      %s19 = int_to_ptr.vmem [resolvable:$true] %s18
      %21 = dma.hbm_to_vmem [thread:$0]  %s0, 128, %s19, [#allocation4]
    $region5: #{tpu_custom_call.1} parent=1 // pred_fallthru
      _
    // Predicated region
    $region6: #{tpu_custom_call.1} parent=1 // pred_check
      _
    $region7: #{tpu_custom_call.1} parent=1 // pred_check_branch
      %23 = sbr.rel (0) target = $region9
    $region8: #{tpu_custom_call.1} parent=1 // pred_region
      %s25 = ssub.s32 2048, 2048
      %26 = vsyncadd [#allocation7], %s25
      %s27 = sshll.u32 [#allocation6], 4
      %s28 = int_to_ptr.vmem [resolvable:$true] %s27
      %33 = dma.hbm_to_vmem [thread:$0]  %s1, 2048, %s28, [#allocation7], 128, 128, 8
    $region9: #{tpu_custom_call.1} parent=1 // pred_fallthru
      _
    // Predicated region
    $region10: #{tpu_custom_call.1} parent=1 // pred_check
      _
    $region11: #{tpu_custom_call.1} parent=1 // pred_check_branch
      %35 = sbr.rel (0) target = $region13
    $region12: #{tpu_custom_call.1} parent=1 // pred_region
      _
    $region13: #{tpu_custom_call.1} parent=1 // pred_fallthru
      _
    // Predicated region
    $region14: #{tpu_custom_call.1} parent=1 // pred_check
      _
    $region15: #{tpu_custom_call.1} parent=1 // pred_check_branch
      %37 = sbr.rel (0) target = $region17
    $region16: #{tpu_custom_call.1} parent=1 // pred_region
      %s39 = ssub.s32 2048, 2048
      %40 = vsyncadd [#allocation7], %s39
      %s41 = sshll.u32 [#allocation8], 4
      %s42 = int_to_ptr.vmem [resolvable:$true] %s41
      %47 = dma.hbm_to_vmem [thread:$0]  %s3, 2048, %s42, [#allocation7], 128, 128, 8
    $region17: #{tpu_custom_call.1} parent=1 // pred_fallthru
      _
    // Predicated region
    $region18: #{tpu_custom_call.1} parent=1 // pred_check
      _
    $region19: #{tpu_custom_call.1} parent=1 // pred_check_branch
      %49 = sbr.rel (0) target = $region21
    $region20: #{tpu_custom_call.1} parent=1 // pred_region
      %50 = dma.done [#allocation4], 128
    $region21: #{tpu_custom_call.1} parent=1 // pred_fallthru
      _
    // Predicated region
    $region22: #{tpu_custom_call.1} parent=1 // pred_check
      _
    $region23: #{tpu_custom_call.1} parent=1 // pred_check_branch
      %52 = sbr.rel (0) target = $region25
    $region24: #{tpu_custom_call.1} parent=1 // pred_region
      %53 = dma.done [#allocation7], 2048
    $region25: #{tpu_custom_call.1} parent=1 // pred_fallthru
      _
    // Predicated region
    $region26: #{tpu_custom_call.1} parent=1 // pred_check
      _
    $region27: #{tpu_custom_call.1} parent=1 // pred_check_branch
      %55 = sbr.rel (0) target = $region29
    $region28: #{tpu_custom_call.1} parent=1 // pred_region
      %56 = dma.done [#allocation7], 2048
    $region29: #{tpu_custom_call.1} parent=1 // pred_fallthru
      _
    %p57 = scmp.eq.s32.totalorder 0, 0
    // Predicated region
    $region30: #{tpu_custom_call.1} parent=1 // pred_check
      %p58 = pneg %p57
    $region31: #{tpu_custom_call.1} parent=1 // pred_check_branch
      %60 = sbr.rel (%p58) target = $region33
    $region32: #{tpu_custom_call.1} parent=1 // pred_region
      %61 = vst [vmem:[#allocation2] sm:$0xff] 0.0
    $region33: #{tpu_custom_call.1} parent=1 // pred_fallthru
      _
    %v62 = vld [vmem:[#allocation2] sm:$0xff]
    %v63 = vld [vmem:[#allocation3] sm:$0xff]
    %v64 = vld [vmem:[#allocation6] sm:$0xff]
    %v65 = vld [vmem:[#allocation6 + $0x8] sm:$0xff]
    %v66 = vld [vmem:[#allocation6 + $0x10] sm:$0xff]
    %v67 = vld [vmem:[#allocation6 + $0x18] sm:$0xff]
    %v68 = vld [vmem:[#allocation6 + $0x20] sm:$0xff]
    %v69 = vld [vmem:[#allocation6 + $0x28] sm:$0xff]
    %v70 = vld [vmem:[#allocation6 + $0x30] sm:$0xff]
    %v71 = vld [vmem:[#allocation6 + $0x38] sm:$0xff]
    %v72 = vld [vmem:[#allocation6 + $0x40] sm:$0xff]
    %v73 = vld [vmem:[#allocation6 + $0x48] sm:$0xff]
    %v74 = vld [vmem:[#allocation6 + $0x50] sm:$0xff]
    %v75 = vld [vmem:[#allocation6 + $0x58] sm:$0xff]
    %v76 = vld [vmem:[#allocation6 + $0x60] sm:$0xff]
    %v77 = vld [vmem:[#allocation6 + $0x68] sm:$0xff]
    %v78 = vld [vmem:[#allocation6 + $0x70] sm:$0xff]
    %v79 = vld [vmem:[#allocation6 + $0x78] sm:$0xff]
    %80 = vmatprep.subr.mxu0 0.0
    %81 = vmatpush1.msra.mxu0 %v64
    %82 = vmatprep.subr.mxu0 0.0
    %83 = vmatpush1.msra.mxu0 %v65
    %84 = vmatprep.subr.mxu0 0.0
    %85 = vmatpush1.msra.mxu0 %v66
    %86 = vmatprep.subr.mxu0 0.0
    %87 = vmatpush1.msra.mxu0 %v67
    %88 = vmatprep.subr.mxu0 0.0
    %89 = vmatpush1.msra.mxu0 %v68
    %90 = vmatprep.subr.mxu0 0.0
    %91 = vmatpush1.msra.mxu0 %v69
    %92 = vmatprep.subr.mxu0 0.0
    %93 = vmatpush1.msra.mxu0 %v70
    %94 = vmatprep.subr.mxu0 0.0
    %95 = vmatpush1.msra.mxu0 %v71
    %96 = vmatprep.subr.mxu0 0.0
    %97 = vmatpush1.msra.mxu0 %v72
    %98 = vmatprep.subr.mxu0 0.0
    %99 = vmatpush1.msra.mxu0 %v73
    %100 = vmatprep.subr.mxu0 0.0
    %101 = vmatpush1.msra.mxu0 %v74
    %102 = vmatprep.subr.mxu0 0.0
    %103 = vmatpush1.msra.mxu0 %v75
    %104 = vmatprep.subr.mxu0 0.0
    %105 = vmatpush1.msra.mxu0 %v76
    %106 = vmatprep.subr.mxu0 0.0
    %107 = vmatpush1.msra.mxu0 %v77
    %108 = vmatprep.subr.mxu0 0.0
    %109 = vmatpush1.msra.mxu0 %v78
    %110 = vmatprep.subr.mxu0 0.0
    %111 = vmatpush1.msra.mxu0 %v79
    %112 = vmatprep.subr.mxu0 0.0
    %113 = vmatpush1.msra.mxu0 0.0
    %114 = vmatprep.subr.mxu0 0.0
    %115 = vmatpush1.msra.mxu0 0.0
    %116 = vmatprep.subr.mxu0 0.0
    %117 = vmatpush1.msra.mxu0 0.0
    %118 = vmatprep.subr.mxu0 0.0
    %119 = vmatpush1.msra.mxu0 0.0
    %120 = vmatprep.subr.mxu0 0.0
    %121 = vmatpush1.msra.mxu0 0.0
    %122 = vmatprep.subr.mxu0 0.0
    %123 = vmatpush1.msra.mxu0 0.0
    %124 = vmatprep.subr.mxu0 0.0
    %125 = vmatpush1.msra.mxu0 0.0
    %126 = vmatprep.subr.mxu0 0.0
    %127 = vmatpush1.msra.mxu0 0.0
    %128 = vmatprep.subr.mxu0 0.0
    %129 = vmatpush1.msra.mxu0 0.0
    %130 = vmatprep.subr.mxu0 0.0
    %131 = vmatpush1.msra.mxu0 0.0
    %132 = vmatprep.subr.mxu0 0.0
    %133 = vmatpush1.msra.mxu0 0.0
    %134 = vmatprep.subr.mxu0 0.0
    %135 = vmatpush1.msra.mxu0 0.0
    %136 = vmatprep.subr.mxu0 0.0
    %137 = vmatpush1.msra.mxu0 0.0
    %138 = vmatprep.subr.mxu0 0.0
    %139 = vmatpush1.msra.mxu0 0.0
    %140 = vmatprep.subr.mxu0 0.0
    %141 = vmatpush1.msra.mxu0 0.0
    %142 = vmatprep.subr.mxu0 0.0
    %143 = vmatpush1.msra.mxu0 0.0
    %144 = vmatprep.mubr.f32.mxu0 0.0
    %145 = vmatmul.mubr.f32.gmra.mrb[0].mxu0 %v63
    %v146 = vpop.f32.mrb[0].mxu0
    %v147 = vadd.f32 0.0, %v146
    %v148 = vpop.f32.mrb[0].mxu0
    %149 = vdwg.mxu0
    %v150 = vadd.f32 %v62, %v147
    %151 = vst [vmem:[#allocation2] sm:$0xff] %v150
    // Predicated region
    $region34: #{tpu_custom_call.1} parent=1 // pred_check
      %p152 = pneg %p57
    $region35: #{tpu_custom_call.1} parent=1 // pred_check_branch
      %154 = sbr.rel (%p152) target = $region37
    $region36: #{tpu_custom_call.1} parent=1 // pred_region
      %v155 = vld [vmem:[#allocation2] sm:$0xff]
      %v156 = vld [vmem:[%s2] sm:$0x1]
      %v158 = vlaneseq
      %v159 = vshrl.u32 %v158, 7
      %v160 = vsub.s32 0, %v159
      %v161 = vrot.slane %v156, %v160
      %v163 = vadd.f32 %v155, %v161
      %164 = vadd.xlane.f32.xlu0 %v163
      %v165 = vpop.xlane.xlu0 %164
      %v166 = vadd.f32 %v165, 1e-12
      %v167 = vrcp.pop %v166
      %v168 = vmul.f32 %v163, %v167
      %v169 = vld [vmem:[#allocation8] sm:$0xff]
      %v170 = vld [vmem:[#allocation8 + $0x8] sm:$0xff]
      %v171 = vld [vmem:[#allocation8 + $0x10] sm:$0xff]
      %v172 = vld [vmem:[#allocation8 + $0x18] sm:$0xff]
      %v173 = vld [vmem:[#allocation8 + $0x20] sm:$0xff]
      %v174 = vld [vmem:[#allocation8 + $0x28] sm:$0xff]
      %v175 = vld [vmem:[#allocation8 + $0x30] sm:$0xff]
      %v176 = vld [vmem:[#allocation8 + $0x38] sm:$0xff]
      %v177 = vld [vmem:[#allocation8 + $0x40] sm:$0xff]
      %v178 = vld [vmem:[#allocation8 + $0x48] sm:$0xff]
      %v179 = vld [vmem:[#allocation8 + $0x50] sm:$0xff]
      %v180 = vld [vmem:[#allocation8 + $0x58] sm:$0xff]
      %v181 = vld [vmem:[#allocation8 + $0x60] sm:$0xff]
      %v182 = vld [vmem:[#allocation8 + $0x68] sm:$0xff]
      %v183 = vld [vmem:[#allocation8 + $0x70] sm:$0xff]
      %v184 = vld [vmem:[#allocation8 + $0x78] sm:$0xff]
      %185 = vmatprep.subr.mxu0 0.0
      %186 = vmatpush1.msra.mxu0 %v169
      %187 = vmatprep.subr.mxu0 0.0
      %188 = vmatpush1.msra.mxu0 %v170
      %189 = vmatprep.subr.mxu0 0.0
      %190 = vmatpush1.msra.mxu0 %v171
      %191 = vmatprep.subr.mxu0 0.0
      %192 = vmatpush1.msra.mxu0 %v172
      %193 = vmatprep.subr.mxu0 0.0
      %194 = vmatpush1.msra.mxu0 %v173
      %195 = vmatprep.subr.mxu0 0.0
      %196 = vmatpush1.msra.mxu0 %v174
      %197 = vmatprep.subr.mxu0 0.0
      %198 = vmatpush1.msra.mxu0 %v175
      %199 = vmatprep.subr.mxu0 0.0
      %200 = vmatpush1.msra.mxu0 %v176
      %201 = vmatprep.subr.mxu0 0.0
      %202 = vmatpush1.msra.mxu0 %v177
      %203 = vmatprep.subr.mxu0 0.0
      %204 = vmatpush1.msra.mxu0 %v178
      %205 = vmatprep.subr.mxu0 0.0
      %206 = vmatpush1.msra.mxu0 %v179
      %207 = vmatprep.subr.mxu0 0.0
      %208 = vmatpush1.msra.mxu0 %v180
      %209 = vmatprep.subr.mxu0 0.0
      %210 = vmatpush1.msra.mxu0 %v181
      %211 = vmatprep.subr.mxu0 0.0
      %212 = vmatpush1.msra.mxu0 %v182
      %213 = vmatprep.subr.mxu0 0.0
      %214 = vmatpush1.msra.mxu0 %v183
      %215 = vmatprep.subr.mxu0 0.0
      %216 = vmatpush1.msra.mxu0 %v184
      %217 = vmatprep.subr.mxu0 0.0
      %218 = vmatpush1.msra.mxu0 0.0
      %219 = vmatprep.subr.mxu0 0.0
      %220 = vmatpush1.msra.mxu0 0.0
      %221 = vmatprep.subr.mxu0 0.0
      %222 = vmatpush1.msra.mxu0 0.0
      %223 = vmatprep.subr.mxu0 0.0
      %224 = vmatpush1.msra.mxu0 0.0
      %225 = vmatprep.subr.mxu0 0.0
      %226 = vmatpush1.msra.mxu0 0.0
      %227 = vmatprep.subr.mxu0 0.0
      %228 = vmatpush1.msra.mxu0 0.0
      %229 = vmatprep.subr.mxu0 0.0
      %230 = vmatpush1.msra.mxu0 0.0
      %231 = vmatprep.subr.mxu0 0.0
      %232 = vmatpush1.msra.mxu0 0.0
      %233 = vmatprep.subr.mxu0 0.0
      %234 = vmatpush1.msra.mxu0 0.0
      %235 = vmatprep.subr.mxu0 0.0
      %236 = vmatpush1.msra.mxu0 0.0
      %237 = vmatprep.subr.mxu0 0.0
      %238 = vmatpush1.msra.mxu0 0.0
      %239 = vmatprep.subr.mxu0 0.0
      %240 = vmatpush1.msra.mxu0 0.0
      %241 = vmatprep.subr.mxu0 0.0
      %242 = vmatpush1.msra.mxu0 0.0
      %243 = vmatprep.subr.mxu0 0.0
      %244 = vmatpush1.msra.mxu0 0.0
      %245 = vmatprep.subr.mxu0 0.0
      %246 = vmatpush1.msra.mxu0 0.0
      %247 = vmatprep.subr.mxu0 0.0
      %248 = vmatpush1.msra.mxu0 0.0
      %249 = vmatprep.mubr.f32.mxu0 0.0
      %250 = vmatmul.mubr.f32.gmra.mrb[0].mxu0 %v168
      %v251 = vpop.f32.mrb[0].mxu0
      %v252 = vadd.f32 0.0, %v251
      %v253 = vpop.f32.mrb[0].mxu0
      %254 = vdwg.mxu0
      %255 = vst [vmem:[#allocation9] sm:$0xff] %v252
    $region37: #{tpu_custom_call.1} parent=1 // pred_fallthru
      _
    // Predicated region
    $region38: #{tpu_custom_call.1} parent=1 // pred_check
      _
    $region39: #{tpu_custom_call.1} parent=1 // pred_check_branch
      %257 = sbr.rel (0) target = $region41
    $region40: #{tpu_custom_call.1} parent=1 // pred_region
      %s259 = ssub.s32 128, 128
      %260 = vsyncadd [#allocation5], %s259
      %s262 = sshll.u32 [#allocation9], 4
      %s263 = int_to_ptr.vmem [resolvable:$true] %s262
      %265 = dma.vmem_to_hbm [thread:$0]  %s263, 128, %s4, [#allocation5]
    $region41: #{tpu_custom_call.1} parent=1 // pred_fallthru
      _
    // Predicated region
    $region42: #{tpu_custom_call.1} parent=1 // pred_check
      _
    $region43: #{tpu_custom_call.1} parent=1 // pred_check_branch
      %267 = sbr.rel (0) target = $region45
    $region44: #{tpu_custom_call.1} parent=1 // pred_region
      %268 = dma.done [#allocation5], 128
    $region45: #{tpu_custom_call.1} parent=1 // pred_fallthru
      _
    %269 = vsyncpa [#allocation4], 1
    %270 = vsyncpa [#allocation7], 1
    %271 = vsyncpa [#allocation5], 1

</llo_original>
